<compile_context>
chip_gen: v5e
topology: v5e:2x2
jax: 0.10.0
libtpu: 0.0.40
codegen_flags: <defaults>
</compile_context>

<pallas_src>
import math
import functools

import jax
import jax.numpy as jnp
from jax.experimental import pallas as pl
from jax.experimental.pallas import tpu as pltpu

_EPS = 1e-5
_LANES = 128


def _round_up(n, m):
    return ((n + m - 1) // m) * m


# ---------------------------------------------------------------------------
# Fused Pallas kernel: all layers in one call, activations stay in VMEM/vregs.
# ---------------------------------------------------------------------------
def _make_fused_mlp_kernel(num_hidden):
    has_rest = num_hidden > 1

    def kernel(*refs):
        it = iter(refs)
        x_ref = next(it)
        if num_hidden > 0:
            w_first_ref = next(it)                       # [in_p, hid_p]
            w_rest_ref = next(it) if has_rest else None  # [L-1, hid_p, hid_p]
            gb_ref = next(it)                            # [L, 2, hid_p] f32
        w_last_ref = next(it)                            # [last_in_p, out_p]
        b_last_ref = next(it)                            # [1, out_p] f32
        o_ref = next(it)                                 # [B, out_p] f32

        dot_dt = w_last_ref.dtype                        # bf16 (default) or f32
        h = x_ref[...]                                   # [B, in_p] f32

        for l in range(num_hidden):
            w = w_first_ref[...] if l == 0 else w_rest_ref[l - 1]
            gb = gb_ref[l]                               # [2, hid_p]
            gamma = gb[0:1, :]
            beta = gb[1:2, :]

            # Linear; the bias is dropped: it is exactly cancelled by the BN
            # mean subtraction below.
            z = jnp.dot(h.astype(dot_dt), w, preferred_element_type=jnp.float32)

            # BatchNorm1d (training mode): one-pass batch stats, affine folded
            # into a single scale/shift. All elementwise math stays f32.
            mean = jnp.mean(z, axis=0, keepdims=True)
            mean_sq = jnp.mean(z * z, axis=0, keepdims=True)
            var = jnp.maximum(mean_sq - mean * mean, 0.0)
            scale = gamma * jax.lax.rsqrt(var + _EPS)
            shift = beta - mean * scale
            h = jnp.maximum(z * scale + shift, 0.0)      # BN-affine + ReLU

        o_ref[...] = (
            jnp.dot(h.astype(dot_dt), w_last_ref[...],
                    preferred_element_type=jnp.float32)
            + b_last_ref[...]
        )

    return kernel


@functools.partial(jax.jit, static_argnames=("num_classes",))
def _mlp_forward_impl(packed, x, num_classes):
    x = x.astype(jnp.float32)
    num_hidden = packed["gb"].shape[0] if "gb" in packed else 0
    in_p = (packed["w_first"] if num_hidden > 0 else packed["w_last"]).shape[0]

    B, F = x.shape
    if F < in_p:  # lane-pad the input so the x load is unmasked / lane-dense
        x = jnp.pad(x, ((0, 0), (0, in_p - F)))

    operands = [x]
    if num_hidden > 0:
        operands.append(packed["w_first"])
        if "w_rest" in packed:
            operands.append(packed["w_rest"])
        operands.append(packed["gb"])
    operands += [packed["w_last"], packed["b_last"]]

    out_p = packed["b_last"].shape[1]
    kernel = _make_fused_mlp_kernel(num_hidden)

    # Tiny problem: whole arrays live in VMEM as single blocks (no grid).
    # NOTE: BN stats cover the full batch, so the batch must NOT be split over a
    # grid without a two-pass / carried-partial-sum stats scheme.
    # TODO(synk): large-batch path -> batch grid with resident weights, BN sums
    #             via ones-vector matmul on the idle MXU, tiles sized for v7x's
    #             64 MiB VMEM (CompilerParams(vmem_limit_bytes=...)), and a
    #             cross-core (CMEM/VMEM_SHARED) or two-pass BN before marking
    #             the batch axis "parallel".
    out = pl.pallas_call(
        kernel,
        out_shape=jax.ShapeDtypeStruct((B, out_p), jnp.float32),
        in_specs=[pl.BlockSpec(memory_space=pltpu.MemorySpace.VMEM)] * len(operands),
        out_specs=pl.BlockSpec(memory_space=pltpu.MemorySpace.VMEM),
    )(*operands)
    return out[:, :num_classes]


# ---------------------------------------------------------------------------
# Parameter init (deterministic, mirrors PyTorch nn.Linear / BatchNorm1d defaults)
# ---------------------------------------------------------------------------
def _init_linear(key, in_f, out_f):
    kw, kb = jax.random.split(key)
    bound = 1.0 / math.sqrt(in_f)  # kaiming_uniform(a=sqrt(5)) reduces to this bound
    w = jax.random.uniform(kw, (out_f, in_f), jnp.float32, -bound, bound)
    b = jax.random.uniform(kb, (out_f,), jnp.float32, -bound, bound)
    return w, b


def init_mlp_params(key, num_features, num_classes, hidden_units=32, num_layers=1):
    if num_layers < 1:
        raise ValueError()
    params = {"hidden": [], "last": None}
    if num_layers == 1:
        params["last"] = _init_linear(key, num_features, num_classes)
        return params
    keys = jax.random.split(key, num_layers)
    in_f = num_features
    for i in range(num_layers - 1):
        w, b = _init_linear(keys[i], in_f, hidden_units)
        gamma = jnp.ones((hidden_units,), jnp.float32)   # BN weight
        beta = jnp.zeros((hidden_units,), jnp.float32)   # BN bias
        params["hidden"].append((w, b, gamma, beta))
        in_f = hidden_units
    params["last"] = _init_linear(keys[-1], in_f, num_classes)
    return params


def pack_params_for_kernel(params, dot_dtype=jnp.bfloat16):
    """Pack ONCE: pre-transpose weights to [in, out], zero-pad feature dims to
    128 lanes, stack hidden-layer weights / (gamma, beta) into a few arrays,
    and drop the (mathematically dead) hidden-layer Linear biases.

    Padded channels stay exactly zero through Linear -> BN -> ReLU."""
    hidden = params["hidden"]
    L = len(hidden)
    packed = {}

    if L > 0:
        w0, _b0, g0, be0 = hidden[0]                      # w0: [hid, in]
        hid, in_f = w0.shape
        hid_p = _round_up(hid, _LANES)
        in_p = _round_up(in_f, _LANES)

        w_first = jnp.zeros((in_p, hid_p), jnp.float32).at[:in_f, :hid].set(w0.T)
        packed["w_first"] = w_first.astype(dot_dtype)

        gb = jnp.zeros((L, 2, hid_p), jnp.float32)
        gb = gb.at[0, 0, :hid].set(g0).at[0, 1, :hid].set(be0)

        if L > 1:
            w_rest = jnp.zeros((L - 1, hid_p, hid_p), jnp.float32)
            for i, (w, _b, g, be) in enumerate(hidden[1:]):
                o_f, i_f = w.shape
                w_rest = w_rest.at[i, :i_f, :o_f].set(w.T)
                gb = gb.at[i + 1, 0, :o_f].set(g).at[i + 1, 1, :o_f].set(be)
            packed["w_rest"] = w_rest.astype(dot_dtype)

        packed["gb"] = gb                                 # f32: BN math stays f32
        last_in_p = hid_p
    else:
        last_in_p = _round_up(params["last"][0].shape[1], _LANES)

    w_last, b_last = params["last"]
    out_f, in_f = w_last.shape
    out_p = _round_up(out_f, _LANES)
    w_pad = jnp.zeros((last_in_p, out_p), jnp.float32).at[:in_f, :out_f].set(w_last.T)
    packed["w_last"] = w_pad.astype(dot_dtype)
    packed["b_last"] = jnp.zeros((1, out_p), jnp.float32).at[0, :out_f].set(b_last)
    return packed


class MLP:
    """Packs parameters once at construction; __call__ is a single fused kernel."""

    def __init__(self, key, num_features, num_classes, hidden_units=32,
                 num_layers=1, dot_dtype=jnp.bfloat16):
        self.num_classes = num_classes
        self.params = init_mlp_params(key, num_features, num_classes,
                                      hidden_units=hidden_units,
                                      num_layers=num_layers)
        self.packed = pack_params_for_kernel(self.params, dot_dtype=dot_dtype)

    def __call__(self, x):
        return _mlp_forward_impl(self.packed, x, self.num_classes)


# ---------------------------------------------------------------------------
# Pure-JAX reference (PyTorch semantics).  dot_dtype lets us emulate the bf16
# MXU path for tolerance-matched comparison.
# ---------------------------------------------------------------------------
def mlp_reference(params, x, dot_dtype=jnp.float32):
    x = x.astype(jnp.float32)
    for (w, b, gamma, beta) in params["hidden"]:
        h = jnp.dot(x.astype(dot_dtype), w.T.astype(dot_dtype),
                    preferred_element_type=jnp.float32) + b
        mean = jnp.mean(h, axis=0, keepdims=True)
        var = jnp.mean((h - mean) ** 2, axis=0, keepdims=True)
        h = (h - mean) / jnp.sqrt(var + _EPS) * gamma + beta
        x = jnp.maximum(h, 0.0)
    w, b = params["last"]
    return jnp.dot(x.astype(dot_dtype), w.T.astype(dot_dtype),
                   preferred_element_type=jnp.float32) + b


if __name__ == "__main__":
    key = jax.random.PRNGKey(0)
    k_param, k_x = jax.random.split(key)

    batch = 8
    num_features = 16
    num_classes = 10
    hidden_units = 32

    x = jax.random.normal(k_x, (batch, num_features), jnp.float32)

    # --- Strict correctness check: f32 weights, 3 layers (2 hidden blocks). ---
    mlp_f32 = MLP(k_param, num_features, num_classes, hidden_units=hidden_units,
                  num_layers=3, dot_dtype=jnp.float32)
    out = jax.block_until_ready(mlp_f32(x))
    ref = mlp_reference(mlp_f32.params, x)
    assert out.shape == (batch, num_classes)
    assert jnp.allclose(out, ref, atol=2e-4, rtol=2e-4), "f32 mismatch (3 layers)"

    # --- Default (bf16 MXU) path, compared against a bf16-dot reference. ------
    mlp3 = MLP(k_param, num_features, num_classes, hidden_units=hidden_units,
               num_layers=3)
    out3 = jax.block_until_ready(mlp3(x))
    ref3 = mlp_reference(mlp3.params, x, dot_dtype=jnp.bfloat16)
    assert out3.shape == (batch, num_classes)
    assert jnp.allclose(out3, ref3, atol=2e-2, rtol=2e-2), "bf16 mismatch (3 layers)"

    # --- Two-layer path (single hidden block). --------------------------------
    mlp2 = MLP(k_param, num_features, num_classes, hidden_units=hidden_units,
               num_layers=2)
    out2 = jax.block_until_ready(mlp2(x))
    ref2 = mlp_reference(mlp2.params, x, dot_dtype=jnp.bfloat16)
    assert jnp.allclose(out2, ref2, atol=2e-2, rtol=2e-2), "bf16 mismatch (2 layers)"

    # --- Single-layer (pure Linear) path. --------------------------------------
    mlp1 = MLP(k_param, num_features, num_classes, num_layers=1)
    out1 = jax.block_until_ready(mlp1(x))
    ref1 = mlp_reference(mlp1.params, x, dot_dtype=jnp.bfloat16)
    assert jnp.allclose(out1, ref1, atol=2e-2, rtol=2e-2), "bf16 mismatch (1 layer)"

    print("KERNEL_OK")
</pallas_src>

<mosaic_0001>
module attributes {stable_mosaic.version = 11 : i64} {
  func.func @kernel(%arg0: memref<8x128xf32, #tpu.memory_space<vmem>>, %arg1: memref<128x128xf32, #tpu.memory_space<vmem>>, %arg2: memref<1x128x128xf32, #tpu.memory_space<vmem>>, %arg3: memref<2x2x128xf32, #tpu.memory_space<vmem>>, %arg4: memref<128x128xf32, #tpu.memory_space<vmem>>, %arg5: memref<1x128xf32, #tpu.memory_space<vmem>>, %arg6: memref<8x128xf32, #tpu.memory_space<vmem>>) attributes {dimension_semantics = [], scalar_prefetch = 0 : i64, scratch_operands = 0 : i64, tpu.core_type = #tpu.core_type<tc>} {
    %c0 = arith.constant 0 : index
    %c0_0 = arith.constant 0 : index
    %0 = vector.load %arg0[%c0, %c0_0] : memref<8x128xf32, #tpu.memory_space<vmem>>, vector<8x128xf32>
    %c0_1 = arith.constant 0 : index
    %c0_2 = arith.constant 0 : index
    %1 = vector.load %arg1[%c0_1, %c0_2] : memref<128x128xf32, #tpu.memory_space<vmem>>, vector<128x128xf32>
    %c0_3 = arith.constant 0 : index
    %c0_4 = arith.constant 0 : index
    %c0_5 = arith.constant 0 : index
    %2 = vector.load %arg3[%c0_3, %c0_4, %c0_5] : memref<2x2x128xf32, #tpu.memory_space<vmem>>, vector<1x2x128xf32>
    %3 = vector.shape_cast %2 : vector<1x2x128xf32> to vector<2x128xf32>
    %4 = vector.extract_strided_slice %3 {offsets = [0, 0], sizes = [1, 128], strides = [1, 1]} : vector<2x128xf32> to vector<1x128xf32>
    %5 = vector.extract_strided_slice %3 {offsets = [1, 0], sizes = [1, 128], strides = [1, 1]} : vector<2x128xf32> to vector<1x128xf32>
    %cst = arith.constant dense<0.000000e+00> : vector<8x128xf32>
    %6 = tpu.matmul %0, %1, %cst {dimension_numbers = #tpu.dot_dimension_numbers<[1], [0], [0], [1], [0, 0, 1, 1], [], []>} : vector<8x128xf32>, vector<128x128xf32>, vector<8x128xf32> -> vector<8x128xf32>
    %cst_6 = arith.constant dense<0.000000e+00> : vector<128xf32>
    %7 = vector.multi_reduction <add>, %6, %cst_6 [0] : vector<8x128xf32> to vector<128xf32>
    %8 = vector.shape_cast %7 : vector<128xf32> to vector<1x128xf32>
    %cst_7 = arith.constant 8.000000e+00 : f32
    %9 = vector.broadcast %cst_7 : f32 to vector<1x128xf32>
    %10 = arith.divf %8, %9 : vector<1x128xf32>
    %11 = arith.mulf %6, %6 : vector<8x128xf32>
    %cst_8 = arith.constant dense<0.000000e+00> : vector<128xf32>
    %12 = vector.multi_reduction <add>, %11, %cst_8 [0] : vector<8x128xf32> to vector<128xf32>
    %13 = vector.shape_cast %12 : vector<128xf32> to vector<1x128xf32>
    %cst_9 = arith.constant 8.000000e+00 : f32
    %14 = vector.broadcast %cst_9 : f32 to vector<1x128xf32>
    %15 = arith.divf %13, %14 : vector<1x128xf32>
    %16 = arith.mulf %10, %10 : vector<1x128xf32>
    %17 = arith.subf %15, %16 : vector<1x128xf32>
    %cst_10 = arith.constant 0.000000e+00 : f32
    %18 = vector.broadcast %cst_10 : f32 to vector<1x128xf32>
    %19 = arith.maximumf %17, %18 : vector<1x128xf32>
    %cst_11 = arith.constant 9.99999974E-6 : f32
    %20 = vector.broadcast %cst_11 : f32 to vector<1x128xf32>
    %21 = arith.addf %19, %20 : vector<1x128xf32>
    %22 = math.rsqrt %21 : vector<1x128xf32>
    %23 = arith.mulf %4, %22 : vector<1x128xf32>
    %24 = arith.mulf %10, %23 : vector<1x128xf32>
    %25 = arith.subf %5, %24 : vector<1x128xf32>
    %26 = vector.broadcast %23 : vector<1x128xf32> to vector<8x128xf32>
    %27 = arith.mulf %6, %26 : vector<8x128xf32>
    %28 = vector.broadcast %25 : vector<1x128xf32> to vector<8x128xf32>
    %29 = arith.addf %27, %28 : vector<8x128xf32>
    %cst_12 = arith.constant 0.000000e+00 : f32
    %30 = vector.broadcast %cst_12 : f32 to vector<8x128xf32>
    %31 = arith.maximumf %29, %30 : vector<8x128xf32>
    %c0_13 = arith.constant 0 : index
    %c0_14 = arith.constant 0 : index
    %c0_15 = arith.constant 0 : index
    %32 = vector.load %arg2[%c0_13, %c0_14, %c0_15] : memref<1x128x128xf32, #tpu.memory_space<vmem>>, vector<1x128x128xf32>
    %33 = vector.shape_cast %32 : vector<1x128x128xf32> to vector<128x128xf32>
    %c1 = arith.constant 1 : index
    %c0_16 = arith.constant 0 : index
    %c0_17 = arith.constant 0 : index
    %34 = vector.load %arg3[%c1, %c0_16, %c0_17] : memref<2x2x128xf32, #tpu.memory_space<vmem>>, vector<1x2x128xf32>
    %35 = vector.shape_cast %34 : vector<1x2x128xf32> to vector<2x128xf32>
    %36 = vector.extract_strided_slice %35 {offsets = [0, 0], sizes = [1, 128], strides = [1, 1]} : vector<2x128xf32> to vector<1x128xf32>
    %37 = vector.extract_strided_slice %35 {offsets = [1, 0], sizes = [1, 128], strides = [1, 1]} : vector<2x128xf32> to vector<1x128xf32>
    %cst_18 = arith.constant dense<0.000000e+00> : vector<8x128xf32>
    %38 = tpu.matmul %31, %33, %cst_18 {dimension_numbers = #tpu.dot_dimension_numbers<[1], [0], [0], [1], [0, 0, 1, 1], [], []>} : vector<8x128xf32>, vector<128x128xf32>, vector<8x128xf32> -> vector<8x128xf32>
    %cst_19 = arith.constant dense<0.000000e+00> : vector<128xf32>
    %39 = vector.multi_reduction <add>, %38, %cst_19 [0] : vector<8x128xf32> to vector<128xf32>
    %40 = vector.shape_cast %39 : vector<128xf32> to vector<1x128xf32>
    %cst_20 = arith.constant 8.000000e+00 : f32
    %41 = vector.broadcast %cst_20 : f32 to vector<1x128xf32>
    %42 = arith.divf %40, %41 : vector<1x128xf32>
    %43 = arith.mulf %38, %38 : vector<8x128xf32>
    %cst_21 = arith.constant dense<0.000000e+00> : vector<128xf32>
    %44 = vector.multi_reduction <add>, %43, %cst_21 [0] : vector<8x128xf32> to vector<128xf32>
    %45 = vector.shape_cast %44 : vector<128xf32> to vector<1x128xf32>
    %cst_22 = arith.constant 8.000000e+00 : f32
    %46 = vector.broadcast %cst_22 : f32 to vector<1x128xf32>
    %47 = arith.divf %45, %46 : vector<1x128xf32>
    %48 = arith.mulf %42, %42 : vector<1x128xf32>
    %49 = arith.subf %47, %48 : vector<1x128xf32>
    %cst_23 = arith.constant 0.000000e+00 : f32
    %50 = vector.broadcast %cst_23 : f32 to vector<1x128xf32>
    %51 = arith.maximumf %49, %50 : vector<1x128xf32>
    %cst_24 = arith.constant 9.99999974E-6 : f32
    %52 = vector.broadcast %cst_24 : f32 to vector<1x128xf32>
    %53 = arith.addf %51, %52 : vector<1x128xf32>
    %54 = math.rsqrt %53 : vector<1x128xf32>
    %55 = arith.mulf %36, %54 : vector<1x128xf32>
    %56 = arith.mulf %42, %55 : vector<1x128xf32>
    %57 = arith.subf %37, %56 : vector<1x128xf32>
    %58 = vector.broadcast %55 : vector<1x128xf32> to vector<8x128xf32>
    %59 = arith.mulf %38, %58 : vector<8x128xf32>
    %60 = vector.broadcast %57 : vector<1x128xf32> to vector<8x128xf32>
    %61 = arith.addf %59, %60 : vector<8x128xf32>
    %cst_25 = arith.constant 0.000000e+00 : f32
    %62 = vector.broadcast %cst_25 : f32 to vector<8x128xf32>
    %63 = arith.maximumf %61, %62 : vector<8x128xf32>
    %c0_26 = arith.constant 0 : index
    %c0_27 = arith.constant 0 : index
    %64 = vector.load %arg4[%c0_26, %c0_27] : memref<128x128xf32, #tpu.memory_space<vmem>>, vector<128x128xf32>
    %cst_28 = arith.constant dense<0.000000e+00> : vector<8x128xf32>
    %65 = tpu.matmul %63, %64, %cst_28 {dimension_numbers = #tpu.dot_dimension_numbers<[1], [0], [0], [1], [0, 0, 1, 1], [], []>} : vector<8x128xf32>, vector<128x128xf32>, vector<8x128xf32> -> vector<8x128xf32>
    %c0_29 = arith.constant 0 : index
    %c0_30 = arith.constant 0 : index
    %66 = vector.load %arg5[%c0_29, %c0_30] : memref<1x128xf32, #tpu.memory_space<vmem>>, vector<1x128xf32>
    %67 = vector.broadcast %66 : vector<1x128xf32> to vector<8x128xf32>
    %68 = arith.addf %65, %67 : vector<8x128xf32>
    %c0_31 = arith.constant 0 : index
    %c0_32 = arith.constant 0 : index
    %69 = vector.load %arg6[%c0_31, %c0_32] : memref<8x128xf32, #tpu.memory_space<vmem>>, vector<8x128xf32>
    tpu.vector_store %arg6[%c0_31, %c0_32], %68 {strides = array<i32>} : memref<8x128xf32, #tpu.memory_space<vmem>>, vector<8x128xf32>,
    return
  }
}

</mosaic_0001>

<llo_original>
// kernel: _mlp_forward_impl.1
$region0: #{_mlp_forward_impl.1}
  #allocation0 [shape = 'u32[]', space=smem, size = 0x4, offset = 0x4, fixed_abs, tag = 'smem constant byte address 0x4 - core index']
  #allocation1 [shape = 'u32[72,128]{1,0:T(1,128)}', space=vmem, size = 0x9000, scoped, tag = 'internal scratch']
  %s0 = inlined_call_operand.vmem [shape: f32[8,128], index: 0, kind: input, shape index: {}]
  %s1 = inlined_call_operand.hbm [shape: f32[128,128], index: 1, kind: input, shape index: {}]
  %s2 = inlined_call_operand.hbm [shape: f32[1,128,128], index: 2, kind: input, shape index: {}]
  %s3 = inlined_call_operand.vmem [shape: f32[2,2,128], index: 3, kind: input, shape index: {}]
  %s4 = inlined_call_operand.hbm [shape: f32[128,128], index: 4, kind: input, shape index: {}]
  %s5 = inlined_call_operand.vmem [shape: f32[1,128], index: 5, kind: input, shape index: {}]
  %s6 = inlined_call_operand.hbm [shape: f32[8,128], index: 6, kind: output, shape index: {}]
  %s7 = sld [smem:[#allocation0]]
  $region46: #{_mlp_forward_impl.1} parent=0
    _
  %s9 = ssub.s32 1, %s7
  %s10 = scalar_select 0, %s9, %s7
  $region1: #{_mlp_forward_impl.1} parent=0
    #allocation2 [shape = 'u8[65536]{0}', space=vmem, size = 0x10000, scoped, tag = 'input window, operand 1, single buffered']
    #allocation3 [shape = 's32[1]{0}', space=sflag, size = 0x4, scoped, tag = 'scoped memory for _mlp_forward_impl.1']
    #allocation4 [shape = 's32[1]{0}', space=sflag, size = 0x4, scoped, tag = 'scoped memory for _mlp_forward_impl.1']
    #allocation5 [shape = 'u8[65536]{0}', space=vmem, size = 0x10000, scoped, tag = 'input window, operand 2, single buffered']
    #allocation6 [shape = 's32[1]{0}', space=sflag, size = 0x4, scoped, tag = 'scoped memory for _mlp_forward_impl.1']
    #allocation7 [shape = 'u8[65536]{0}', space=vmem, size = 0x10000, scoped, tag = 'input window, operand 4, single buffered']
    #allocation8 [shape = 'u8[4096]{0}', space=vmem, size = 0x1000, scoped, tag = 'output window, operand 0, single buffered']
    %11 = vsyncpa [#allocation3], 0
    %12 = vsyncpa [#allocation6], 0
    %13 = vsyncpa [#allocation4], 0
    // Predicated region
    $region2: #{_mlp_forward_impl.1} parent=1 // pred_check
      _
    $region3: #{_mlp_forward_impl.1} parent=1 // pred_check_branch
      %15 = sbr.rel (0) target = $region5
    $region4: #{_mlp_forward_impl.1} parent=1 // pred_region
      _
    $region5: #{_mlp_forward_impl.1} parent=1 // pred_fallthru
      _
    // Predicated region
    $region6: #{_mlp_forward_impl.1} parent=1 // pred_check
      _
    $region7: #{_mlp_forward_impl.1} parent=1 // pred_check_branch
      %17 = sbr.rel (0) target = $region9
    $region8: #{_mlp_forward_impl.1} parent=1 // pred_region
      %19 = vsyncadd [#allocation3], 0
      %s20 = sshll.u32 %s1, 4
      %s21 = int_to_ptr.hbm [resolvable:$true] %s20
      %s22 = sshll.u32 [#allocation2], 4
      %s23 = int_to_ptr.vmem [resolvable:$true] %s22
      %28 = dma.hbm_to_vmem [thread:$0]  %s21, 2048, %s23, [#allocation3], 128, 128, 8
    $region9: #{_mlp_forward_impl.1} parent=1 // pred_fallthru
      _
    // Predicated region
    $region10: #{_mlp_forward_impl.1} parent=1 // pred_check
      _
    $region11: #{_mlp_forward_impl.1} parent=1 // pred_check_branch
      %30 = sbr.rel (0) target = $region13
    $region12: #{_mlp_forward_impl.1} parent=1 // pred_region
      %32 = vsyncadd [#allocation6], 0
      %s33 = sshll.u32 %s2, 4
      %s34 = int_to_ptr.hbm [resolvable:$true] %s33
      %s35 = sshll.u32 [#allocation5], 4
      %s36 = int_to_ptr.vmem [resolvable:$true] %s35
      %41 = dma.hbm_to_vmem [thread:$0]  %s34, 2048, %s36, [#allocation6], 128, 128, 8
    $region13: #{_mlp_forward_impl.1} parent=1 // pred_fallthru
      _
    // Predicated region
    $region14: #{_mlp_forward_impl.1} parent=1 // pred_check
      _
    $region15: #{_mlp_forward_impl.1} parent=1 // pred_check_branch
      %43 = sbr.rel (0) target = $region17
    $region16: #{_mlp_forward_impl.1} parent=1 // pred_region
      _
    $region17: #{_mlp_forward_impl.1} parent=1 // pred_fallthru
      _
    // Predicated region
    $region18: #{_mlp_forward_impl.1} parent=1 // pred_check
      _
    $region19: #{_mlp_forward_impl.1} parent=1 // pred_check_branch
      %45 = sbr.rel (0) target = $region21
    $region20: #{_mlp_forward_impl.1} parent=1 // pred_region
      %47 = vsyncadd [#allocation6], 0
      %s48 = sshll.u32 %s4, 4
      %s49 = int_to_ptr.hbm [resolvable:$true] %s48
      %s50 = sshll.u32 [#allocation7], 4
      %s51 = int_to_ptr.vmem [resolvable:$true] %s50
      %56 = dma.hbm_to_vmem [thread:$0]  %s49, 2048, %s51, [#allocation6], 128, 128, 8
    $region21: #{_mlp_forward_impl.1} parent=1 // pred_fallthru
      _
    // Predicated region
    $region22: #{_mlp_forward_impl.1} parent=1 // pred_check
      _
    $region23: #{_mlp_forward_impl.1} parent=1 // pred_check_branch
      %58 = sbr.rel (0) target = $region25
    $region24: #{_mlp_forward_impl.1} parent=1 // pred_region
      _
    $region25: #{_mlp_forward_impl.1} parent=1 // pred_fallthru
      _
    // Predicated region
    $region26: #{_mlp_forward_impl.1} parent=1 // pred_check
      _
    $region27: #{_mlp_forward_impl.1} parent=1 // pred_check_branch
      %60 = sbr.rel (0) target = $region29
    $region28: #{_mlp_forward_impl.1} parent=1 // pred_region
      %62 = dma.done [#allocation3], 2048
    $region29: #{_mlp_forward_impl.1} parent=1 // pred_fallthru
      _
    // Predicated region
    $region30: #{_mlp_forward_impl.1} parent=1 // pred_check
      _
    $region31: #{_mlp_forward_impl.1} parent=1 // pred_check_branch
      %64 = sbr.rel (0) target = $region33
    $region32: #{_mlp_forward_impl.1} parent=1 // pred_region
      %66 = dma.done [#allocation6], 2048
    $region33: #{_mlp_forward_impl.1} parent=1 // pred_fallthru
      _
    // Predicated region
    $region34: #{_mlp_forward_impl.1} parent=1 // pred_check
      _
    $region35: #{_mlp_forward_impl.1} parent=1 // pred_check_branch
      %68 = sbr.rel (0) target = $region37
    $region36: #{_mlp_forward_impl.1} parent=1 // pred_region
      %70 = dma.done [#allocation6], 2048
    $region37: #{_mlp_forward_impl.1} parent=1 // pred_fallthru
      _
    %v71 = vld [vmem:[%s0] sm:$0xff]
    %v72 = vld [vmem:[#allocation2] sm:$0xff]
    %v73 = vld [vmem:[#allocation2 + $0x8] sm:$0xff]
    %v74 = vld [vmem:[#allocation2 + $0x10] sm:$0xff]
    %v75 = vld [vmem:[#allocation2 + $0x18] sm:$0xff]
    %v76 = vld [vmem:[#allocation2 + $0x20] sm:$0xff]
    %v77 = vld [vmem:[#allocation2 + $0x28] sm:$0xff]
    %v78 = vld [vmem:[#allocation2 + $0x30] sm:$0xff]
    %v79 = vld [vmem:[#allocation2 + $0x38] sm:$0xff]
    %v80 = vld [vmem:[#allocation2 + $0x40] sm:$0xff]
    %v81 = vld [vmem:[#allocation2 + $0x48] sm:$0xff]
    %v82 = vld [vmem:[#allocation2 + $0x50] sm:$0xff]
    %v83 = vld [vmem:[#allocation2 + $0x58] sm:$0xff]
    %v84 = vld [vmem:[#allocation2 + $0x60] sm:$0xff]
    %v85 = vld [vmem:[#allocation2 + $0x68] sm:$0xff]
    %v86 = vld [vmem:[#allocation2 + $0x70] sm:$0xff]
    %v87 = vld [vmem:[#allocation2 + $0x78] sm:$0xff]
    %v88 = vld [vmem:[%s3] sm:$0x3]
    %89 = vmatpush.msra.mxu0 %v87
    %90 = vmatpush.msra.mxu0 %v86
    %91 = vmatpush.msra.mxu0 %v85
    %92 = vmatpush.msra.mxu0 %v84
    %93 = vmatpush.msra.mxu0 %v83
    %94 = vmatpush.msra.mxu0 %v82
    %95 = vmatpush.msra.mxu0 %v81
    %96 = vmatpush.msra.mxu0 %v80
    %97 = vmatpush.msra.mxu0 %v79
    %98 = vmatpush.msra.mxu0 %v78
    %99 = vmatpush.msra.mxu0 %v77
    %100 = vmatpush.msra.mxu0 %v76
    %101 = vmatpush.msra.mxu0 %v75
    %102 = vmatpush.msra.mxu0 %v74
    %103 = vmatpush.msra.mxu0 %v73
    %104 = vmatpush.msra.mxu0 %v72
    %105 = vmatmul.f32.gmra.mxu0 %v71
    %v106 = vpop.f32.mrf.mxu0
    %v107 = vadd.f32 0.0, %v106
    %108 = vdwg.mxu0
    %v109 = vrot.slane %v107, 4
    %v110 = vadd.f32 %v107, %v109
    %v111 = vrot.slane %v110, 2
    %v112 = vadd.f32 %v110, %v111
    %v113 = vrot.slane %v112, 1
    %v114 = vadd.f32 %v112, %v113
    %v115 = vrcp.pop 8.0
    %v116 = vmul.f32 8.0, %v115
    %v117 = vsub.f32 1.0, %v116
    %v118 = vmul.f32 %v115, %v117
    %v119 = vadd.f32 %v115, %v118
    %vm120 = vweird.f32 %v115
    %v121 = vsel %vm120, %v115, %v119
    %v122 = vmul.f32 %v114, %v121
    %v123 = vmul.f32 %v107, %v107
    %v124 = vrot.slane %v123, 4
    %v125 = vadd.f32 %v123, %v124
    %v126 = vrot.slane %v125, 2
    %v127 = vadd.f32 %v125, %v126
    %v128 = vrot.slane %v127, 1
    %v129 = vadd.f32 %v127, %v128
    %v130 = vmul.f32 %v129, %v121
    %v131 = vmul.f32 %v122, %v122
    %v132 = vsub.f32 %v130, %v131
    %v133 = vmax.f32 %v132, 0.0
    %v134 = vadd.f32 %v133, 1e-05
    %v135 = vrsqrt.pop %v134
    %v136 = vmul.f32 %v135, %v134
    %v137 = vmul.f32 %v136, %v135
    %v138 = vmul.f32 0.5, %v137
    %v139 = vsub.f32 1.5, %v138
    %v140 = vmul.f32 %v135, %v139
    %vm141 = vweird.f32 %v134
    %vm142 = vweird.f32 %v135
    %vm143 = vmor %vm141, %vm142
    %v144 = vsel %vm143, %v135, %v140
    %v145 = vmul.f32 %v88, %v144
    %v146 = vmul.f32 %v122, %v145
    %v148 = vrot.slane %v146, 7
    %v150 = vsub.f32 %v88, %v148
    %v151 = vperm.slane %v145, 0
    %v152 = vmul.f32 %v107, %v151
    %v153 = vperm.slane %v150, 1
    %v154 = vadd.f32 %v152, %v153
    %v155 = vmax.f32 %v154, 0.0
    %v156 = vld [vmem:[#allocation5] sm:$0xff]
    %v157 = vld [vmem:[#allocation5 + $0x8] sm:$0xff]
    %v158 = vld [vmem:[#allocation5 + $0x10] sm:$0xff]
    %v159 = vld [vmem:[#allocation5 + $0x18] sm:$0xff]
    %v160 = vld [vmem:[#allocation5 + $0x20] sm:$0xff]
    %v161 = vld [vmem:[#allocation5 + $0x28] sm:$0xff]
    %v162 = vld [vmem:[#allocation5 + $0x30] sm:$0xff]
    %v163 = vld [vmem:[#allocation5 + $0x38] sm:$0xff]
    %v164 = vld [vmem:[#allocation5 + $0x40] sm:$0xff]
    %v165 = vld [vmem:[#allocation5 + $0x48] sm:$0xff]
    %v166 = vld [vmem:[#allocation5 + $0x50] sm:$0xff]
    %v167 = vld [vmem:[#allocation5 + $0x58] sm:$0xff]
    %v168 = vld [vmem:[#allocation5 + $0x60] sm:$0xff]
    %v169 = vld [vmem:[#allocation5 + $0x68] sm:$0xff]
    %v170 = vld [vmem:[#allocation5 + $0x70] sm:$0xff]
    %v171 = vld [vmem:[#allocation5 + $0x78] sm:$0xff]
    %s172 = scalar_lea.vmem %s3, 2
    %v173 = vld [vmem:[%s172] sm:$0x3]
    %174 = vmatpush.msra.mxu0 %v171
    %175 = vmatpush.msra.mxu0 %v170
    %176 = vmatpush.msra.mxu0 %v169
    %177 = vmatpush.msra.mxu0 %v168
    %178 = vmatpush.msra.mxu0 %v167
    %179 = vmatpush.msra.mxu0 %v166
    %180 = vmatpush.msra.mxu0 %v165
    %181 = vmatpush.msra.mxu0 %v164
    %182 = vmatpush.msra.mxu0 %v163
    %183 = vmatpush.msra.mxu0 %v162
    %184 = vmatpush.msra.mxu0 %v161
    %185 = vmatpush.msra.mxu0 %v160
    %186 = vmatpush.msra.mxu0 %v159
    %187 = vmatpush.msra.mxu0 %v158
    %188 = vmatpush.msra.mxu0 %v157
    %189 = vmatpush.msra.mxu0 %v156
    %190 = vmatmul.f32.gmra.mxu0 %v155
    %v191 = vpop.f32.mrf.mxu0
    %v192 = vadd.f32 0.0, %v191
    %193 = vdwg.mxu0
    %v194 = vrot.slane %v192, 4
    %v195 = vadd.f32 %v192, %v194
    %v196 = vrot.slane %v195, 2
    %v197 = vadd.f32 %v195, %v196
    %v198 = vrot.slane %v197, 1
    %v199 = vadd.f32 %v197, %v198
    %v200 = vmul.f32 %v199, %v121
    %v201 = vmul.f32 %v192, %v192
    %v202 = vrot.slane %v201, 4
    %v203 = vadd.f32 %v201, %v202
    %v204 = vrot.slane %v203, 2
    %v205 = vadd.f32 %v203, %v204
    %v206 = vrot.slane %v205, 1
    %v207 = vadd.f32 %v205, %v206
    %v208 = vmul.f32 %v207, %v121
    %v209 = vmul.f32 %v200, %v200
    %v210 = vsub.f32 %v208, %v209
    %v211 = vmax.f32 %v210, 0.0
    %v212 = vadd.f32 %v211, 1e-05
    %v213 = vrsqrt.pop %v212
    %v214 = vmul.f32 %v213, %v212
    %v215 = vmul.f32 %v214, %v213
    %v216 = vmul.f32 0.5, %v215
    %v217 = vsub.f32 1.5, %v216
    %v218 = vmul.f32 %v213, %v217
    %vm219 = vweird.f32 %v212
    %vm220 = vweird.f32 %v213
    %vm221 = vmor %vm219, %vm220
    %v222 = vsel %vm221, %v213, %v218
    %v223 = vmul.f32 %v173, %v222
    %v224 = vmul.f32 %v200, %v223
    %v226 = vrot.slane %v224, 7
    %v228 = vsub.f32 %v173, %v226
    %v229 = vperm.slane %v223, 0
    %v230 = vmul.f32 %v192, %v229
    %v231 = vperm.slane %v228, 1
    %v232 = vadd.f32 %v230, %v231
    %v233 = vmax.f32 %v232, 0.0
    %v234 = vld [vmem:[#allocation7] sm:$0xff]
    %v235 = vld [vmem:[#allocation7 + $0x8] sm:$0xff]
    %v236 = vld [vmem:[#allocation7 + $0x10] sm:$0xff]
    %v237 = vld [vmem:[#allocation7 + $0x18] sm:$0xff]
    %v238 = vld [vmem:[#allocation7 + $0x20] sm:$0xff]
    %v239 = vld [vmem:[#allocation7 + $0x28] sm:$0xff]
    %v240 = vld [vmem:[#allocation7 + $0x30] sm:$0xff]
    %v241 = vld [vmem:[#allocation7 + $0x38] sm:$0xff]
    %v242 = vld [vmem:[#allocation7 + $0x40] sm:$0xff]
    %v243 = vld [vmem:[#allocation7 + $0x48] sm:$0xff]
    %v244 = vld [vmem:[#allocation7 + $0x50] sm:$0xff]
    %v245 = vld [vmem:[#allocation7 + $0x58] sm:$0xff]
    %v246 = vld [vmem:[#allocation7 + $0x60] sm:$0xff]
    %v247 = vld [vmem:[#allocation7 + $0x68] sm:$0xff]
    %v248 = vld [vmem:[#allocation7 + $0x70] sm:$0xff]
    %v249 = vld [vmem:[#allocation7 + $0x78] sm:$0xff]
    %v250 = vld [vmem:[%s5] sm:$0x1]
    %v252 = vperm.slane %v250, 0
    %254 = vmatpush.msra.mxu0 %v249
    %255 = vmatpush.msra.mxu0 %v248
    %256 = vmatpush.msra.mxu0 %v247
    %257 = vmatpush.msra.mxu0 %v246
    %258 = vmatpush.msra.mxu0 %v245
    %259 = vmatpush.msra.mxu0 %v244
    %260 = vmatpush.msra.mxu0 %v243
    %261 = vmatpush.msra.mxu0 %v242
    %262 = vmatpush.msra.mxu0 %v241
    %263 = vmatpush.msra.mxu0 %v240
    %264 = vmatpush.msra.mxu0 %v239
    %265 = vmatpush.msra.mxu0 %v238
    %266 = vmatpush.msra.mxu0 %v237
    %267 = vmatpush.msra.mxu0 %v236
    %268 = vmatpush.msra.mxu0 %v235
    %269 = vmatpush.msra.mxu0 %v234
    %270 = vmatmul.f32.gmra.mxu0 %v233
    %v271 = vpop.f32.mrf.mxu0
    %v272 = vadd.f32 %v252, %v271
    %273 = vdwg.mxu0
    %274 = vst [vmem:[#allocation8] sm:$0xff] %v272
    // Predicated region
    $region38: #{_mlp_forward_impl.1} parent=1 // pred_check
      _
    $region39: #{_mlp_forward_impl.1} parent=1 // pred_check_branch
      %276 = sbr.rel (0) target = $region41
    $region40: #{_mlp_forward_impl.1} parent=1 // pred_region
      %278 = vsyncadd [#allocation4], 0
      %s280 = sshll.u32 [#allocation8], 4
      %s281 = int_to_ptr.vmem [resolvable:$true] %s280
      %s282 = sshll.u32 %s6, 4
      %s283 = int_to_ptr.hbm [resolvable:$true] %s282
      %285 = dma.vmem_to_hbm [thread:$0]  %s281, 128, %s283, [#allocation4]
    $region41: #{_mlp_forward_impl.1} parent=1 // pred_fallthru
      _
    // Predicated region
    $region42: #{_mlp_forward_impl.1} parent=1 // pred_check
      _
    $region43: #{_mlp_forward_impl.1} parent=1 // pred_check_branch
      %287 = sbr.rel (0) target = $region45
    $region44: #{_mlp_forward_impl.1} parent=1 // pred_region
      %289 = dma.done [#allocation4], 128
    $region45: #{_mlp_forward_impl.1} parent=1 // pred_fallthru
      _
    %290 = vsyncpa [#allocation3], 1
    %291 = vsyncpa [#allocation6], 1
    %292 = vsyncpa [#allocation4], 1

</llo_original>
